<compile_context>
chip_gen: v7x
topology: tpu7x:2x2x1
jax: 0.10.0
libtpu: 0.0.40
codegen_flags: <defaults>
</compile_context>

<pallas_src>
import functools

import jax
import jax.numpy as jnp
from jax.experimental import pallas as pl
from jax.experimental.pallas import tpu as pltpu


def _vqvae_loss_kernel(lat_ref, tgt_ref, cb_ref, cbw_t_ref, b_ref,
                       vq_out_ref, rec_out_ref,
                       acc_vq_ref, acc_rec_ref):
    i = pl.program_id(1)            # pixel-tile index within the current image

    # Re-initialise the lane-dense accumulators at the start of every image.
    @pl.when(i == 0)
    def _():
        acc_vq_ref[...] = jnp.zeros_like(acc_vq_ref)
        acc_rec_ref[...] = jnp.zeros_like(acc_rec_ref)

    x = lat_ref[0].astype(jnp.float32)           # (d, TP)  pixels on lanes
    tgt = tgt_ref[0].astype(jnp.float32)         # (C, TP)
    cb = cb_ref[...].astype(jnp.float32)         # (K, d)
    cbw_t = cbw_t_ref[...].astype(jnp.float32)   # (C, K)  = (codebook @ W).T
    b = b_ref[...].astype(jnp.float32)           # (C, 1)

    K = cb.shape[0]

    # Squared distance minus the per-pixel constant ||x||^2 (does not change argmin).
    xc = jnp.dot(cb, x, preferred_element_type=jnp.float32)    # (K, TP) on the MXU
    cb2 = jnp.sum(cb * cb, axis=-1, keepdims=True)             # (K, 1)
    d2 = cb2 - 2.0 * xc                                        # (K, TP)

    # Nearest code with first-index tie-break (matches torch.argmin).
    minval = jnp.min(d2, axis=0, keepdims=True)                # (1, TP)
    iota_k = jax.lax.broadcasted_iota(jnp.int32, d2.shape, 0)  # (K, TP)
    idx = jnp.min(jnp.where(d2 <= minval, iota_k, K), axis=0, keepdims=True)
    onehot = (iota_k == idx).astype(jnp.float32)               # (K, TP)

    # VQ SSE per pixel: ||x - e*||^2 = ||x||^2 + (||e*||^2 - 2<x, e*>) = ||x||^2 + minval.
    x2 = jnp.sum(x * x, axis=0, keepdims=True)                 # (1, TP)
    acc_vq_ref[...] = acc_vq_ref[...] + x2 + minval

    # Straight-through estimator has value q in the forward pass; the decoder
    # (1x1 conv == per-pixel linear) applied to q is a direct gather of
    # (codebook @ W): out = cbw_T @ onehot + b.
    out = jnp.dot(cbw_t, onehot, preferred_element_type=jnp.float32) + b  # (C, TP)
    rdiff = out - tgt
    acc_rec_ref[...] = acc_rec_ref[...] + jnp.sum(rdiff * rdiff, axis=0, keepdims=True)

    # Finalize: one cross-lane reduction + scalar store per image.
    @pl.when(i == pl.num_programs(1) - 1)
    def _():
        vq_out_ref[...] = jnp.sum(acc_vq_ref[...]).reshape(1, 1, 1)
        rec_out_ref[...] = jnp.sum(acc_rec_ref[...]).reshape(1, 1, 1)


def _pick_tile_p(hw, d, c, k, budget_bytes=40 * 1024 * 1024):
    """Largest lane-dense (multiple of 128) tile dividing H*W whose working set
    (double-buffered input tiles + (K, TP) temporaries) fits a conservative VMEM
    budget sized for v7x's 64 MiB VMEM (the smallest of v5e/v6e/v7x)."""
    for cand in (2048, 1024, 512, 256, 128):
        if hw % cand != 0:
            continue
        est = 4 * cand * (4 * (d + c)        # double-buffered latents + target tiles
                          + 8 * k            # d2 / iota / onehot / where temporaries
                          + 4 * (d + c)      # working copies (x, out, rdiff)
                          + 4)               # accumulators
        if est <= budget_bytes:
            return cand
    return hw  # tiny spatial extent: take the whole row as one full block


def vq_vae_loss(latents_nchw, target_nchw, codebook, dec_w, dec_b,
                commitment_weight=1.0, vqloss_weight=1.0, tile_p=None):
    """latents: (N, d, H, W), target: (N, C, H, W), codebook: (K, d),
    dec_w: (d, C) decoder 1x1-conv weight (already transposed), dec_b: (C,)."""
    N, d, H, W = latents_nchw.shape
    _, C, _, _ = target_nchw.shape
    K = codebook.shape[0]
    HW = H * W
    P = N * HW

    if tile_p is None:
        tile_p = _pick_tile_p(HW, d, C, K)
    assert HW % tile_p == 0, "spatial pixel count must divide the tile size"
    n_tiles = HW // tile_p

    # Pure reshapes: NCHW already has features on the slow axis, pixels contiguous.
    lat = latents_nchw.reshape(N, d, HW)
    tgt = target_nchw.reshape(N, C, HW)

    # Fuse the decoder weight with the codebook once (tiny (K,d)x(d,C) matmul);
    # full-f32 precision so the in-kernel one-hot gather stays exact.
    cbw_t = jnp.dot(codebook.astype(jnp.float32), dec_w.astype(jnp.float32),
                    precision=jax.lax.Precision.HIGHEST).T          # (C, K)
    b2d = dec_b.reshape(C, 1).astype(jnp.float32)

    # Explicit scoped-VMEM limit only when the working set outgrows the default
    # (v5e default is 16 MiB); cap at 64 MiB so the same choice is safe on v7x.
    est = 4 * (2 * 2 * (d + C) * tile_p
               + 2 * (K * d + C * K + C)
               + 8 * K * tile_p
               + 4 * (d + C) * tile_p
               + 4 * tile_p)
    vmem_limit = None if 2 * est <= 16 * 1024 * 1024 else int(
        min(2 * est, 64 * 1024 * 1024))

    vq_part, rec_part = pl.pallas_call(
        _vqvae_loss_kernel,
        out_shape=(jax.ShapeDtypeStruct((N, 1, 1), jnp.float32),
                   jax.ShapeDtypeStruct((N, 1, 1), jnp.float32)),
        grid_spec=pltpu.PrefetchScalarGridSpec(
            num_scalar_prefetch=0,
            grid=(N, n_tiles),
            in_specs=[
                pl.BlockSpec((1, d, tile_p), lambda n, i: (n, 0, i)),
                pl.BlockSpec((1, C, tile_p), lambda n, i: (n, 0, i)),
                pl.BlockSpec((K, d), lambda n, i: (0, 0)),
                pl.BlockSpec((C, K), lambda n, i: (0, 0)),
                pl.BlockSpec((C, 1), lambda n, i: (0, 0)),
            ],
            out_specs=(pl.BlockSpec((1, 1, 1), lambda n, i: (n, 0, 0)),
                       pl.BlockSpec((1, 1, 1), lambda n, i: (n, 0, 0))),
            scratch_shapes=[pltpu.VMEM((1, tile_p), jnp.float32),
                            pltpu.VMEM((1, tile_p), jnp.float32)],
        ),
        compiler_params=pltpu.CompilerParams(
            dimension_semantics=("parallel", "arbitrary"),
            vmem_limit_bytes=vmem_limit),
    )(lat, tgt, codebook, cbw_t, b2d)

    vq_sse = jnp.sum(vq_part)
    rec_sse = jnp.sum(rec_part)
    vq_mse = vq_sse / jnp.float32(P * d)
    rec_mse = rec_sse / jnp.float32(P * C)

    # codebook_loss + commitment_weight * commitment_loss (identical values in fwd)
    vq_loss = vq_mse + commitment_weight * vq_mse
    total = vqloss_weight * vq_loss + rec_mse
    return {"Loss": total, "VQ Loss": vq_loss, "Reconstruction": rec_mse}


def _reference(latents, target, codebook, dec_w, dec_b, cw=1.0, vw=1.0):
    # Pure-JAX reference of the PyTorch forward.
    lat_nhwc = jnp.transpose(latents, (0, 2, 3, 1))                 # (N,H,W,d)
    diffs = lat_nhwc[..., None, :] - codebook                       # (N,H,W,K,d)
    dist = jnp.linalg.norm(diffs, axis=-1)                          # (N,H,W,K)
    idx = jnp.argmin(dist, axis=-1)
    q = codebook[idx]                                               # (N,H,W,d)
    vq_mse = jnp.mean((lat_nhwc - q) ** 2)
    vq_loss = vq_mse + cw * vq_mse
    out = jnp.einsum("nhwd,dc->nhwc", q, dec_w,
                     precision=jax.lax.Precision.HIGHEST) + dec_b   # 1x1 conv
    tgt_nhwc = jnp.transpose(target, (0, 2, 3, 1))
    rec = jnp.mean((out - tgt_nhwc) ** 2)
    return {"Loss": vw * vq_loss + rec, "VQ Loss": vq_loss, "Reconstruction": rec}


if __name__ == "__main__":
    key = jax.random.PRNGKey(0)
    k1, k2, k3, k4, k5 = jax.random.split(key, 5)

    N, d, H, W = 2, 4, 16, 16     # latents (N, d, H, W)
    C = 4                         # image / target channels
    K = 8                         # codebook size

    latents = jax.random.normal(k1, (N, d, H, W), dtype=jnp.float32)
    target = jax.random.normal(k2, (N, C, H, W), dtype=jnp.float32)
    codebook = jax.random.normal(k3, (K, d), dtype=jnp.float32)          # Embedding(K, d)
    dec_w = jax.random.normal(k4, (d, C), dtype=jnp.float32) * 0.1       # decoder 1x1 conv
    dec_b = jax.random.normal(k5, (C,), dtype=jnp.float32) * 0.01

    result = jax.jit(functools.partial(vq_vae_loss,
                                       commitment_weight=1.0,
                                       vqloss_weight=1.0))(
        latents, target, codebook, dec_w, dec_b)
    jax.block_until_ready(result)

    ref = _reference(latents, target, codebook, dec_w, dec_b)
    for name in ("Loss", "VQ Loss", "Reconstruction"):
        assert jnp.allclose(result[name], ref[name], rtol=1e-4, atol=1e-5), (
            name, result[name], ref[name])

    print("KERNEL_OK")
</pallas_src>

<mosaic_0001>
module attributes {stable_mosaic.version = 11 : i64} {
  func.func @_vqvae_loss_kernel(%arg0: i32, %arg1: i32, %arg2: memref<1x4x256xf32, #tpu.memory_space<vmem>>, %arg3: memref<1x4x256xf32, #tpu.memory_space<vmem>>, %arg4: memref<8x4xf32, #tpu.memory_space<vmem>>, %arg5: memref<4x8xf32, #tpu.memory_space<vmem>>, %arg6: memref<4x1xf32, #tpu.memory_space<vmem>>, %arg7: memref<1x1x1xf32, #tpu.memory_space<vmem>>, %arg8: memref<1x1x1xf32, #tpu.memory_space<vmem>>, %arg9: memref<1x256xf32, #tpu.memory_space<vmem>>, %arg10: memref<1x256xf32, #tpu.memory_space<vmem>>) attributes {dimension_semantics = [#tpu.dimension_semantics<parallel>, #tpu.dimension_semantics<arbitrary>], iteration_bounds = array<i64: 2, 1>, scalar_prefetch = 0 : i64, scratch_operands = 2 : i64, tpu.core_type = #tpu.core_type<tc>, window_params = [{transform_indices = @transform_0, window_bounds = array<i64: 1, 4, 256>}, {transform_indices = @transform_1, window_bounds = array<i64: 1, 4, 256>}, {pipeline_mode = #tpu.pipeline_mode<synchronous>, transform_indices = @transform_2, window_bounds = array<i64: 8, 4>}, {pipeline_mode = #tpu.pipeline_mode<synchronous>, transform_indices = @transform_3, window_bounds = array<i64: 4, 8>}, {pipeline_mode = #tpu.pipeline_mode<synchronous>, transform_indices = @transform_4, window_bounds = array<i64: 4, 1>}, {transform_indices = @transform_5, window_bounds = array<i64: 1, 1, 1>}, {transform_indices = @transform_6, window_bounds = array<i64: 1, 1, 1>}]} {
    %c0_i32 = arith.constant 0 : i32
    %0 = arith.cmpi eq, %arg1, %c0_i32 : i32
    %1 = arith.extui %0 : i1 to i32
    %c0_i32_0 = arith.constant 0 : i32
    %2 = arith.cmpi ne, %1, %c0_i32_0 : i32
    scf.if %2 {
      %cst_29 = arith.constant 0.000000e+00 : f32
      %51 = vector.broadcast %cst_29 : f32 to vector<1x256xf32>
      %c0_30 = arith.constant 0 : index
      %c0_31 = arith.constant 0 : index
      %52 = vector.load %arg9[%c0_30, %c0_31] : memref<1x256xf32, #tpu.memory_space<vmem>>, vector<1x256xf32>
      tpu.vector_store %arg9[%c0_30, %c0_31], %51 {strides = array<i32>} : memref<1x256xf32, #tpu.memory_space<vmem>>, vector<1x256xf32>,
      %cst_32 = arith.constant 0.000000e+00 : f32
      %53 = vector.broadcast %cst_32 : f32 to vector<1x256xf32>
      %c0_33 = arith.constant 0 : index
      %c0_34 = arith.constant 0 : index
      %54 = vector.load %arg10[%c0_33, %c0_34] : memref<1x256xf32, #tpu.memory_space<vmem>>, vector<1x256xf32>
      tpu.vector_store %arg10[%c0_33, %c0_34], %53 {strides = array<i32>} : memref<1x256xf32, #tpu.memory_space<vmem>>, vector<1x256xf32>,
    } else {
    }
    %c0 = arith.constant 0 : index
    %c0_1 = arith.constant 0 : index
    %c0_2 = arith.constant 0 : index
    %3 = vector.load %arg2[%c0, %c0_1, %c0_2] : memref<1x4x256xf32, #tpu.memory_space<vmem>>, vector<1x4x256xf32>
    %4 = vector.shape_cast %3 : vector<1x4x256xf32> to vector<4x256xf32>
    %c0_3 = arith.constant 0 : index
    %c0_4 = arith.constant 0 : index
    %c0_5 = arith.constant 0 : index
    %5 = vector.load %arg3[%c0_3, %c0_4, %c0_5] : memref<1x4x256xf32, #tpu.memory_space<vmem>>, vector<1x4x256xf32>
    %6 = vector.shape_cast %5 : vector<1x4x256xf32> to vector<4x256xf32>
    %c0_6 = arith.constant 0 : index
    %c0_7 = arith.constant 0 : index
    %7 = vector.load %arg4[%c0_6, %c0_7] : memref<8x4xf32, #tpu.memory_space<vmem>>, vector<8x4xf32>
    %c0_8 = arith.constant 0 : index
    %c0_9 = arith.constant 0 : index
    %8 = vector.load %arg5[%c0_8, %c0_9] : memref<4x8xf32, #tpu.memory_space<vmem>>, vector<4x8xf32>
    %c0_10 = arith.constant 0 : index
    %c0_11 = arith.constant 0 : index
    %9 = vector.load %arg6[%c0_10, %c0_11] : memref<4x1xf32, #tpu.memory_space<vmem>>, vector<4x1xf32>
    %cst = arith.constant dense<0.000000e+00> : vector<8x256xf32>
    %10 = tpu.matmul %7, %4, %cst {dimension_numbers = #tpu.dot_dimension_numbers<[1], [0], [0], [1], [0, 0, 1, 1], [], []>} : vector<8x4xf32>, vector<4x256xf32>, vector<8x256xf32> -> vector<8x256xf32>
    %11 = arith.mulf %7, %7 : vector<8x4xf32>
    %cst_12 = arith.constant dense<0.000000e+00> : vector<8xf32>
    %12 = vector.multi_reduction <add>, %11, %cst_12 [1] : vector<8x4xf32> to vector<8xf32>
    %13 = vector.shape_cast %12 : vector<8xf32> to vector<8x1xf32>
    %cst_13 = arith.constant 2.000000e+00 : f32
    %14 = vector.broadcast %cst_13 : f32 to vector<8x256xf32>
    %15 = arith.mulf %14, %10 : vector<8x256xf32>
    %16 = vector.broadcast %13 : vector<8x1xf32> to vector<8x256xf32>
    %17 = arith.subf %16, %15 : vector<8x256xf32>
    %cst_14 = arith.constant dense<0x7F800000> : vector<256xf32>
    %18 = vector.multi_reduction <minimumf>, %17, %cst_14 [0] : vector<8x256xf32> to vector<256xf32>
    %19 = vector.shape_cast %18 : vector<256xf32> to vector<1x256xf32>
    %20 = tpu.iota {dimensions = array<i32: 0>} : vector<8x256xi32>
    %21 = vector.broadcast %19 : vector<1x256xf32> to vector<8x256xf32>
    %22 = arith.cmpf ole, %17, %21 : vector<8x256xf32>
    %c8_i32 = arith.constant 8 : i32
    %23 = vector.broadcast %c8_i32 : i32 to vector<8x256xi32>
    %24 = arith.select %22, %20, %23 : vector<8x256xi1>, vector<8x256xi32>
    %cst_15 = arith.constant dense<2147483647> : vector<256xi32>
    %25 = vector.multi_reduction <minsi>, %24, %cst_15 [0] : vector<8x256xi32> to vector<256xi32>
    %26 = vector.shape_cast %25 : vector<256xi32> to vector<1x256xi32>
    %27 = vector.broadcast %26 : vector<1x256xi32> to vector<8x256xi32>
    %28 = arith.cmpi eq, %20, %27 : vector<8x256xi32>
    %29 = arith.extui %28 : vector<8x256xi1> to vector<8x256xi32>
    %30 = arith.sitofp %29 : vector<8x256xi32> to vector<8x256xf32>
    %31 = arith.mulf %4, %4 : vector<4x256xf32>
    %cst_16 = arith.constant dense<0.000000e+00> : vector<256xf32>
    %32 = vector.multi_reduction <add>, %31, %cst_16 [0] : vector<4x256xf32> to vector<256xf32>
    %33 = vector.shape_cast %32 : vector<256xf32> to vector<1x256xf32>
    %c0_17 = arith.constant 0 : index
    %c0_18 = arith.constant 0 : index
    %34 = vector.load %arg9[%c0_17, %c0_18] : memref<1x256xf32, #tpu.memory_space<vmem>>, vector<1x256xf32>
    %35 = arith.addf %34, %33 : vector<1x256xf32>
    %36 = arith.addf %35, %19 : vector<1x256xf32>
    %c0_19 = arith.constant 0 : index
    %c0_20 = arith.constant 0 : index
    %37 = vector.load %arg9[%c0_19, %c0_20] : memref<1x256xf32, #tpu.memory_space<vmem>>, vector<1x256xf32>
    tpu.vector_store %arg9[%c0_19, %c0_20], %36 {strides = array<i32>} : memref<1x256xf32, #tpu.memory_space<vmem>>, vector<1x256xf32>,
    %cst_21 = arith.constant dense<0.000000e+00> : vector<4x256xf32>
    %38 = tpu.matmul %8, %30, %cst_21 {dimension_numbers = #tpu.dot_dimension_numbers<[1], [0], [0], [1], [0, 0, 1, 1], [], []>} : vector<4x8xf32>, vector<8x256xf32>, vector<4x256xf32> -> vector<4x256xf32>
    %39 = vector.broadcast %9 : vector<4x1xf32> to vector<4x256xf32>
    %40 = arith.addf %38, %39 : vector<4x256xf32>
    %41 = arith.subf %40, %6 : vector<4x256xf32>
    %c0_22 = arith.constant 0 : index
    %c0_23 = arith.constant 0 : index
    %42 = vector.load %arg10[%c0_22, %c0_23] : memref<1x256xf32, #tpu.memory_space<vmem>>, vector<1x256xf32>
    %43 = arith.mulf %41, %41 : vector<4x256xf32>
    %cst_24 = arith.constant dense<0.000000e+00> : vector<256xf32>
    %44 = vector.multi_reduction <add>, %43, %cst_24 [0] : vector<4x256xf32> to vector<256xf32>
    %45 = vector.shape_cast %44 : vector<256xf32> to vector<1x256xf32>
    %46 = arith.addf %42, %45 : vector<1x256xf32>
    %c0_25 = arith.constant 0 : index
    %c0_26 = arith.constant 0 : index
    %47 = vector.load %arg10[%c0_25, %c0_26] : memref<1x256xf32, #tpu.memory_space<vmem>>, vector<1x256xf32>
    tpu.vector_store %arg10[%c0_25, %c0_26], %46 {strides = array<i32>} : memref<1x256xf32, #tpu.memory_space<vmem>>, vector<1x256xf32>,
    %c0_i32_27 = arith.constant 0 : i32
    %48 = arith.cmpi eq, %arg1, %c0_i32_27 : i32
    %49 = arith.extui %48 : i1 to i32
    %c0_i32_28 = arith.constant 0 : i32
    %50 = arith.cmpi ne, %49, %c0_i32_28 : i32
    scf.if %50 {
      %c0_29 = arith.constant 0 : index
      %c0_30 = arith.constant 0 : index
      %51 = vector.load %arg9[%c0_29, %c0_30] : memref<1x256xf32, #tpu.memory_space<vmem>>, vector<1x256xf32>
      %52 = vector.shape_cast %51 : vector<1x256xf32> to vector<1x1x256xf32>
      %cst_31 = arith.constant dense<0.000000e+00> : vector<1xf32>
      %53 = vector.multi_reduction <add>, %52, %cst_31 [1, 2] : vector<1x1x256xf32> to vector<1xf32>
      %54 = vector.shape_cast %53 : vector<1xf32> to vector<1x1x1xf32>
      %55 = vector.extract %54[0, 0, 0] : f32 from vector<1x1x1xf32>
      %56 = vector.broadcast %55 : f32 to vector<1x1x1xf32>
      %c0_32 = arith.constant 0 : index
      %c0_33 = arith.constant 0 : index
      %c0_34 = arith.constant 0 : index
      %57 = vector.load %arg7[%c0_32, %c0_33, %c0_34] : memref<1x1x1xf32, #tpu.memory_space<vmem>>, vector<1x1x1xf32>
      tpu.vector_store %arg7[%c0_32, %c0_33, %c0_34], %56 {strides = array<i32>} : memref<1x1x1xf32, #tpu.memory_space<vmem>>, vector<1x1x1xf32>,
      %c0_35 = arith.constant 0 : index
      %c0_36 = arith.constant 0 : index
      %58 = vector.load %arg10[%c0_35, %c0_36] : memref<1x256xf32, #tpu.memory_space<vmem>>, vector<1x256xf32>
      %59 = vector.shape_cast %58 : vector<1x256xf32> to vector<1x1x256xf32>
      %cst_37 = arith.constant dense<0.000000e+00> : vector<1xf32>
      %60 = vector.multi_reduction <add>, %59, %cst_37 [1, 2] : vector<1x1x256xf32> to vector<1xf32>
      %61 = vector.shape_cast %60 : vector<1xf32> to vector<1x1x1xf32>
      %62 = vector.extract %61[0, 0, 0] : f32 from vector<1x1x1xf32>
      %63 = vector.broadcast %62 : f32 to vector<1x1x1xf32>
      %c0_38 = arith.constant 0 : index
      %c0_39 = arith.constant 0 : index
      %c0_40 = arith.constant 0 : index
      %64 = vector.load %arg8[%c0_38, %c0_39, %c0_40] : memref<1x1x1xf32, #tpu.memory_space<vmem>>, vector<1x1x1xf32>
      tpu.vector_store %arg8[%c0_38, %c0_39, %c0_40], %63 {strides = array<i32>} : memref<1x1x1xf32, #tpu.memory_space<vmem>>, vector<1x1x1xf32>,
    } else {
    }
    return
  }
  func.func @transform_0(%arg0: i32, %arg1: i32) -> (i32, i32, i32) {
    %c0_i32 = arith.constant 0 : i32
    %c0_i32_0 = arith.constant 0 : i32
    return %arg0, %c0_i32, %arg1 : i32, i32, i32
  }
  func.func @transform_1(%arg0: i32, %arg1: i32) -> (i32, i32, i32) {
    %c0_i32 = arith.constant 0 : i32
    %c0_i32_0 = arith.constant 0 : i32
    return %arg0, %c0_i32, %arg1 : i32, i32, i32
  }
  func.func @transform_2(%arg0: i32, %arg1: i32) -> (i32, i32) {
    %c0_i32 = arith.constant 0 : i32
    %c0_i32_0 = arith.constant 0 : i32
    %c0_i32_1 = arith.constant 0 : i32
    return %c0_i32, %c0_i32_0 : i32, i32
  }
  func.func @transform_3(%arg0: i32, %arg1: i32) -> (i32, i32) {
    %c0_i32 = arith.constant 0 : i32
    %c0_i32_0 = arith.constant 0 : i32
    %c0_i32_1 = arith.constant 0 : i32
    return %c0_i32, %c0_i32_0 : i32, i32
  }
  func.func @transform_4(%arg0: i32, %arg1: i32) -> (i32, i32) {
    %c0_i32 = arith.constant 0 : i32
    %c0_i32_0 = arith.constant 0 : i32
    %c0_i32_1 = arith.constant 0 : i32
    return %c0_i32, %c0_i32_0 : i32, i32
  }
  func.func @transform_5(%arg0: i32, %arg1: i32) -> (i32, i32, i32) {
    %c0_i32 = arith.constant 0 : i32
    %c0_i32_0 = arith.constant 0 : i32
    %c0_i32_1 = arith.constant 0 : i32
    return %arg0, %c0_i32, %c0_i32_0 : i32, i32, i32
  }
  func.func @transform_6(%arg0: i32, %arg1: i32) -> (i32, i32, i32) {
    %c0_i32 = arith.constant 0 : i32
    %c0_i32_0 = arith.constant 0 : i32
    %c0_i32_1 = arith.constant 0 : i32
    return %arg0, %c0_i32, %c0_i32_0 : i32, i32, i32
  }
}

</mosaic_0001>

<llo_original>
// kernel: vq_vae_loss.1
$region0: #{vq_vae_loss.1}
  #allocation0 [shape = 'u32[]', space=smem, size = 0x4, offset = 0x4, fixed_abs, tag = 'smem constant byte address 0x4 - core index']
  #allocation1 [shape = 'u32[144,128]{1,0:T(1,128)}', space=vmem, size = 0x12000, scoped, tag = 'internal scratch']
  #allocation2 [shape = 'f32[1,256]{1,0:T(1,128)}', space=vmem, size = 0x400, scoped, tag = 'scratch operand']
  #allocation3 [shape = 'f32[1,256]{1,0:T(1,128)}', space=vmem, size = 0x400, scoped, tag = 'scratch operand']
  %s0 = inlined_call_operand.vmem [shape: f32[2,4,256], index: 0, kind: input, shape index: {}]
  %s1 = inlined_call_operand.vmem [shape: f32[2,4,256], index: 1, kind: input, shape index: {}]
  %s2 = inlined_call_operand.vmem [shape: f32[8,4], index: 2, kind: input, shape index: {}]
  %s3 = inlined_call_operand.vmem [shape: f32[4,8], index: 3, kind: input, shape index: {}]
  %s4 = inlined_call_operand.vmem [shape: f32[4,1], index: 4, kind: input, shape index: {}]
  %s5 = inlined_call_operand.vmem [shape: f32[2,1,1], index: 5, kind: output, shape index: {0}]
  %s6 = inlined_call_operand.vmem [shape: f32[2,1,1], index: 6, kind: output, shape index: {1}]
  %7 = xla_tuple %s5, %s6
  %s8 = sld [smem:[#allocation0]]
  $region69: #{vq_vae_loss.1} parent=0
    _
  %s10 = ssub.s32 1, %s8
  %s11 = scalar_select 0, %s10, %s8
  loop: start=0, step=1, limit=4
  $region2: #{vq_vae_loss.1} parent=0 // loop_pre_header
    _
  $region3: #{vq_vae_loss.1} parent=0 // loop_header
    %s13 = sphi 0, %s17
    %p14 = scmp.ge.s32.totalorder %s13, 4
    %s20 = sphi 0, %s32
    %s21 = sphi 0, %s28
    %s22 = sphi 0, %s20
    %s23 = sphi 0, %s21
    %s24 = sphi 0, %s22
    %s25 = sphi 0, %s23
    %s37 = sphi 0, %s39
    %s40 = sphi 0, %s37
    %s41 = sphi 0, %s40
    %s57 = sphi 0, %s41
    %s65 = sphi 0, %s67
    %s68 = sphi 0, %s65
    %s69 = sphi 0, %s68
    %s85 = sphi 0, %s69
    %s89 = sphi 0, %s89
    %s91 = sphi 0, %s89
    %s92 = sphi 0, %s91
    %s106 = sphi 0, %s92
    %s110 = sphi 0, %s110
    %s112 = sphi 0, %s110
    %s113 = sphi 0, %s112
    %s127 = sphi 0, %s113
    %s131 = sphi 0, %s131
    %s133 = sphi 0, %s131
    %s134 = sphi 0, %s133
    %s148 = sphi 0, %s134
    %s154 = sphi 0, %s156
    %s157 = sphi 0, %s154
    %s158 = sphi 0, %s157
    %s174 = sphi 0, %s158
    %s180 = sphi 0, %s182
    %s183 = sphi 0, %s180
    %s184 = sphi 0, %s183
    %s200 = sphi 0, %s184
  $region4: #{vq_vae_loss.1} parent=0 // loop_header_branch
    %16 = sbr.rel (%p14) target = $region8
  $region5: #{vq_vae_loss.1} parent=0 // loop_body
    %s18 = ssub.s32 %s13, 1
    %s19 = ssub.s32 %s13, 2
    %s26 = sadd.s32 1, %s21
    %p27 = scmp.ge.s32.totalorder %s26, 1
    %s28 = scalar_select %p27, 0, %s26
    %s29 = sadd.s32 1, %s20
    %s30 = scalar_select %p27, %s29, %s20
    %p31 = scmp.ge.s32.totalorder %s30, 2
    %s32 = scalar_select %p31, 0, %s30
    %s33 = ssub.s32 %s20, %s32
    %s34 = ssub.s32 %s21, %s28
    %s35 = sor.u32 %s33, %s34
    %p36 = scmp.eq.s32.totalorder %s35, 0
    %s38 = sadd.s32 %s37, 1
    %s39 = scalar_select %p36, %s37, %s38
    %p42 = pneg %p36
    %p43 = scmp.eq.s32.totalorder %s13, 1
    %p44 = por %p42, %p43
    %p45 = scmp.ne.s32.totalorder %s37, %s40
    %p46 = scmp.eq.s32.totalorder %s13, 0
    %p47 = por %p45, %p46
    %p48 = scmp.ne.s32.totalorder %s37, %s40
    %p49 = scmp.eq.s32.totalorder %s18, 1
    %p50 = por %p48, %p49
    %p51 = scmp.ne.s32.totalorder %s40, %s41
    %p52 = scmp.eq.s32.totalorder %s18, 0
    %p53 = por %p51, %p52
    %p54 = scmp.ne.s32.totalorder %s40, %s41
    %p55 = scmp.eq.s32.totalorder %s19, 1
    %p56 = por %p54, %p55
    %p58 = scmp.ne.s32.totalorder %s41, %s57
    %p59 = scmp.eq.s32.totalorder %s19, 0
    %p60 = por %p58, %p59
    %s61 = ssub.s32 %s20, %s32
    %s62 = ssub.s32 %s21, %s28
    %s63 = sor.u32 %s61, %s62
    %p64 = scmp.eq.s32.totalorder %s63, 0
    %s66 = sadd.s32 %s65, 1
    %s67 = scalar_select %p64, %s65, %s66
    %p70 = pneg %p64
    %p71 = scmp.eq.s32.totalorder %s13, 1
    %p72 = por %p70, %p71
    %p73 = scmp.ne.s32.totalorder %s65, %s68
    %p74 = scmp.eq.s32.totalorder %s13, 0
    %p75 = por %p73, %p74
    %p76 = scmp.ne.s32.totalorder %s65, %s68
    %p77 = scmp.eq.s32.totalorder %s18, 1
    %p78 = por %p76, %p77
    %p79 = scmp.ne.s32.totalorder %s68, %s69
    %p80 = scmp.eq.s32.totalorder %s18, 0
    %p81 = por %p79, %p80
    %p82 = scmp.ne.s32.totalorder %s68, %s69
    %p83 = scmp.eq.s32.totalorder %s19, 1
    %p84 = por %p82, %p83
    %p86 = scmp.ne.s32.totalorder %s69, %s85
    %p87 = scmp.eq.s32.totalorder %s19, 0
    %p88 = por %p86, %p87
    %s90 = sadd.s32 %s89, 1
    %p93 = scmp.eq.s32.totalorder %s13, 1
    %p94 = scmp.ne.s32.totalorder %s89, %s91
    %p95 = scmp.eq.s32.totalorder %s13, 0
    %p96 = por %p94, %p95
    %p97 = scmp.ne.s32.totalorder %s89, %s91
    %p98 = scmp.eq.s32.totalorder %s18, 1
    %p99 = por %p97, %p98
    %p100 = scmp.ne.s32.totalorder %s91, %s92
    %p101 = scmp.eq.s32.totalorder %s18, 0
    %p102 = por %p100, %p101
    %p103 = scmp.ne.s32.totalorder %s91, %s92
    %p104 = scmp.eq.s32.totalorder %s19, 1
    %p105 = por %p103, %p104
    %p107 = scmp.ne.s32.totalorder %s92, %s106
    %p108 = scmp.eq.s32.totalorder %s19, 0
    %p109 = por %p107, %p108
    %s111 = sadd.s32 %s110, 1
    %p114 = scmp.eq.s32.totalorder %s13, 1
    %p115 = scmp.ne.s32.totalorder %s110, %s112
    %p116 = scmp.eq.s32.totalorder %s13, 0
    %p117 = por %p115, %p116
    %p118 = scmp.ne.s32.totalorder %s110, %s112
    %p119 = scmp.eq.s32.totalorder %s18, 1
    %p120 = por %p118, %p119
    %p121 = scmp.ne.s32.totalorder %s112, %s113
    %p122 = scmp.eq.s32.totalorder %s18, 0
    %p123 = por %p121, %p122
    %p124 = scmp.ne.s32.totalorder %s112, %s113
    %p125 = scmp.eq.s32.totalorder %s19, 1
    %p126 = por %p124, %p125
    %p128 = scmp.ne.s32.totalorder %s113, %s127
    %p129 = scmp.eq.s32.totalorder %s19, 0
    %p130 = por %p128, %p129
    %s132 = sadd.s32 %s131, 1
    %p135 = scmp.eq.s32.totalorder %s13, 1
    %p136 = scmp.ne.s32.totalorder %s131, %s133
    %p137 = scmp.eq.s32.totalorder %s13, 0
    %p138 = por %p136, %p137
    %p139 = scmp.ne.s32.totalorder %s131, %s133
    %p140 = scmp.eq.s32.totalorder %s18, 1
    %p141 = por %p139, %p140
    %p142 = scmp.ne.s32.totalorder %s133, %s134
    %p143 = scmp.eq.s32.totalorder %s18, 0
    %p144 = por %p142, %p143
    %p145 = scmp.ne.s32.totalorder %s133, %s134
    %p146 = scmp.eq.s32.totalorder %s19, 1
    %p147 = por %p145, %p146
    %p149 = scmp.ne.s32.totalorder %s134, %s148
    %p150 = scmp.eq.s32.totalorder %s19, 0
    %p151 = por %p149, %p150
    %s152 = ssub.s32 %s20, %s32
    %p153 = scmp.eq.s32.totalorder %s152, 0
    %s155 = sadd.s32 %s154, 1
    %s156 = scalar_select %p153, %s154, %s155
    %p159 = pneg %p153
    %p160 = scmp.eq.s32.totalorder %s13, 1
    %p161 = por %p159, %p160
    %p162 = scmp.ne.s32.totalorder %s154, %s157
    %p163 = scmp.eq.s32.totalorder %s13, 0
    %p164 = por %p162, %p163
    %p165 = scmp.ne.s32.totalorder %s154, %s157
    %p166 = scmp.eq.s32.totalorder %s18, 1
    %p167 = por %p165, %p166
    %p168 = scmp.ne.s32.totalorder %s157, %s158
    %p169 = scmp.eq.s32.totalorder %s18, 0
    %p170 = por %p168, %p169
    %p171 = scmp.ne.s32.totalorder %s157, %s158
    %p172 = scmp.eq.s32.totalorder %s19, 1
    %p173 = por %p171, %p172
    %p175 = scmp.ne.s32.totalorder %s158, %s174
    %p176 = scmp.eq.s32.totalorder %s19, 0
    %p177 = por %p175, %p176
    %s178 = ssub.s32 %s20, %s32
    %p179 = scmp.eq.s32.totalorder %s178, 0
    %s181 = sadd.s32 %s180, 1
    %s182 = scalar_select %p179, %s180, %s181
    %p185 = pneg %p179
    %p186 = scmp.eq.s32.totalorder %s13, 1
    %p187 = por %p185, %p186
    %p188 = scmp.ne.s32.totalorder %s180, %s183
    %p189 = scmp.eq.s32.totalorder %s13, 0
    %p190 = por %p188, %p189
    %p191 = scmp.ne.s32.totalorder %s180, %s183
    %p192 = scmp.eq.s32.totalorder %s18, 1
    %p193 = por %p191, %p192
    %p194 = scmp.ne.s32.totalorder %s183, %s184
    %p195 = scmp.eq.s32.totalorder %s18, 0
    %p196 = por %p194, %p195
    %p197 = scmp.ne.s32.totalorder %s183, %s184
    %p198 = scmp.eq.s32.totalorder %s19, 1
    %p199 = por %p197, %p198
    %p201 = scmp.ne.s32.totalorder %s184, %s200
    %p202 = scmp.eq.s32.totalorder %s19, 0
    %p203 = por %p201, %p202
    %p204 = scmp.le.s32.totalorder 1, %s13
    %p205 = scmp.lt.s32.totalorder %s13, 3
    %p206 = pnand %p204, %p205
    %p207 = pneg %p206
    // Predicated region
    $region9: #{vq_vae_loss.1} parent=5 // pred_check
      _
    $region10: #{vq_vae_loss.1} parent=5 // pred_check_branch
      %209 = sbr.rel (%p206) target = $region12
    $region11: #{vq_vae_loss.1} parent=5 // pred_region
      %s210 = ssub.s32 %s13, 1
      // Predicated region
      $region13: #{vq_vae_loss.1} parent=11 // pred_check
        %p211 = pneg %p102
      $region14: #{vq_vae_loss.1} parent=11 // pred_check_branch
        %213 = sbr.rel (%p211) target = $region16
      $region15: #{vq_vae_loss.1} parent=11 // pred_region
        _
      $region16: #{vq_vae_loss.1} parent=11 // pred_fallthru
        _
      // Predicated region
      $region17: #{vq_vae_loss.1} parent=11 // pred_check
        %p214 = pneg %p123
      $region18: #{vq_vae_loss.1} parent=11 // pred_check_branch
        %216 = sbr.rel (%p214) target = $region20
      $region19: #{vq_vae_loss.1} parent=11 // pred_region
        _
      $region20: #{vq_vae_loss.1} parent=11 // pred_fallthru
        _
      // Predicated region
      $region21: #{vq_vae_loss.1} parent=11 // pred_check
        %p217 = pneg %p144
      $region22: #{vq_vae_loss.1} parent=11 // pred_check_branch
        %219 = sbr.rel (%p217) target = $region24
      $region23: #{vq_vae_loss.1} parent=11 // pred_region
        _
      $region24: #{vq_vae_loss.1} parent=11 // pred_fallthru
        _
    $region12: #{vq_vae_loss.1} parent=5 // pred_fallthru
      _
    %p220 = scmp.lt.s32.totalorder %s13, 2
    // Predicated region
    $region25: #{vq_vae_loss.1} parent=5 // pred_check
      %p221 = pneg %p220
    $region26: #{vq_vae_loss.1} parent=5 // pred_check_branch
      %223 = sbr.rel (%p221) target = $region28
    $region27: #{vq_vae_loss.1} parent=5 // pred_region
      // Predicated region
      $region29: #{vq_vae_loss.1} parent=27 // pred_check
        %p224 = pneg %p47
      $region30: #{vq_vae_loss.1} parent=27 // pred_check_branch
        %226 = sbr.rel (%p224) target = $region32
      $region31: #{vq_vae_loss.1} parent=27 // pred_region
        %s227 = smul.u32 2, %s21
        %p228 = scmp.lt.s32.totalorder %s20, 1
        %s229 = scalar_select %p228, %s20, 1
        %p230 = scmp.lt.s32.totalorder %s227, 1
        %s231 = scalar_select %p230, %s227, 1
        %s232 = smul.addr %s229, 2
        %s233 = sadd.s32 %s231, %s232
        %s234 = smul.addr %s233, 4
        %s235 = scalar_lea.vmem %s0, %s234
        %s236 = smul.u32 2, %s21
      $region32: #{vq_vae_loss.1} parent=27 // pred_fallthru
        _
      // Predicated region
      $region33: #{vq_vae_loss.1} parent=27 // pred_check
        %p237 = pneg %p75
      $region34: #{vq_vae_loss.1} parent=27 // pred_check_branch
        %239 = sbr.rel (%p237) target = $region36
      $region35: #{vq_vae_loss.1} parent=27 // pred_region
        %s240 = smul.u32 2, %s21
        %p241 = scmp.lt.s32.totalorder %s20, 1
        %s242 = scalar_select %p241, %s20, 1
        %p243 = scmp.lt.s32.totalorder %s240, 1
        %s244 = scalar_select %p243, %s240, 1
        %s245 = smul.addr %s242, 2
        %s246 = sadd.s32 %s244, %s245
        %s247 = smul.addr %s246, 4
        %s248 = scalar_lea.vmem %s1, %s247
        %s249 = smul.u32 2, %s21
      $region36: #{vq_vae_loss.1} parent=27 // pred_fallthru
        _
    $region28: #{vq_vae_loss.1} parent=5 // pred_fallthru
      _
    %p250 = scmp.le.s32.totalorder 1, %s13
    %p251 = scmp.lt.s32.totalorder %s13, 3
    %p252 = pnand %p250, %p251
    %p253 = pneg %p252
    // Predicated region
    $region37: #{vq_vae_loss.1} parent=5 // pred_check
      _
    $region38: #{vq_vae_loss.1} parent=5 // pred_check_branch
      %255 = sbr.rel (%p252) target = $region40
    $region39: #{vq_vae_loss.1} parent=5 // pred_region
      %s256 = ssub.s32 %s13, 1
      %s257 = smul.u32 2, %s23
      %p258 = scmp.lt.s32.totalorder %s22, 1
      %s259 = scalar_select %p258, %s22, 1
      %p260 = scmp.lt.s32.totalorder %s257, 1
      %s261 = scalar_select %p260, %s257, 1
      %s262 = smul.addr %s259, 2
      %s263 = sadd.s32 %s261, %s262
      %s264 = smul.addr %s263, 4
      %s265 = scalar_lea.vmem %s0, %s264
      %p266 = pneg %p53
      %p267 = pneg %p50
      %s268 = smul.u32 2, %s23
      %p269 = scmp.lt.s32.totalorder %s22, 1
      %s270 = scalar_select %p269, %s22, 1
      %p271 = scmp.lt.s32.totalorder %s268, 1
      %s272 = scalar_select %p271, %s268, 1
      %s273 = smul.addr %s270, 2
      %s274 = sadd.s32 %s272, %s273
      %s275 = smul.addr %s274, 4
      %s276 = scalar_lea.vmem %s1, %s275
      %p277 = pneg %p81
      %p278 = pneg %p78
      %p279 = pneg %p102
      %p280 = pneg %p99
      %p281 = pneg %p123
      %p282 = pneg %p120
      %p283 = pneg %p144
      %p284 = pneg %p141
      %p285 = pneg %p170
      %p286 = pneg %p167
      %p287 = scmp.lt.s32.totalorder %s22, 1
      %s288 = scalar_select %p287, %s22, 1
      %s289 = scalar_lea.vmem %s5, %s288
      %p290 = pneg %p196
      %p291 = pneg %p193
      %p292 = scmp.lt.s32.totalorder %s22, 1
      %s293 = scalar_select %p292, %s22, 1
      %s294 = scalar_lea.vmem %s6, %s293
      %s295 = smul.u32 2, %s23
      %p296 = scmp.lt.s32.totalorder %s22, 1
      %s297 = scalar_select %p296, %s22, 1
      %p298 = scmp.lt.s32.totalorder %s295, 1
      %s299 = scalar_select %p298, %s295, 1
      %s300 = smul.addr %s297, 2
      %s301 = sadd.s32 %s299, %s300
      %s302 = smul.addr %s301, 4
      %s303 = scalar_lea.vmem %s0, %s302
      %s304 = smul.u32 2, %s23
      %s305 = smul.u32 2, %s23
      %p306 = scmp.lt.s32.totalorder %s22, 1
      %s307 = scalar_select %p306, %s22, 1
      %p308 = scmp.lt.s32.totalorder %s305, 1
      %s309 = scalar_select %p308, %s305, 1
      %s310 = smul.addr %s307, 2
      %s311 = sadd.s32 %s309, %s310
      %s312 = smul.addr %s311, 4
      %s313 = scalar_lea.vmem %s1, %s312
      %s314 = smul.u32 2, %s23
      %p315 = scmp.lt.s32.totalorder %s22, 1
      %s316 = scalar_select %p315, %s22, 1
      %s317 = scalar_lea.vmem %s5, %s316
      %p318 = scmp.lt.s32.totalorder %s22, 1
      %s319 = scalar_select %p318, %s22, 1
      %s320 = scalar_lea.vmem %s6, %s319
      %p321 = scmp.eq.s32.totalorder %s23, 0
      // Predicated region
      $region41: #{vq_vae_loss.1} parent=39 // pred_check
        %p322 = pneg %p321
      $region42: #{vq_vae_loss.1} parent=39 // pred_check_branch
        %324 = sbr.rel (%p322) target = $region44
      $region43: #{vq_vae_loss.1} parent=39 // pred_region
        %v325 = vlaneseq
        %vm326 = vcmp.ge.s32.totalorder %v325, 0
        %vm327 = vcmp.lt.s32.totalorder %v325, 256
        %vm328 = vmand %vm326, %vm327
        %329 = vst.msk [vmem:[#allocation2] sm:$0x3] %vm328, 0.0
        %330 = vst.msk [vmem:[#allocation3] sm:$0x3] %vm328, 0.0
      $region44: #{vq_vae_loss.1} parent=39 // pred_fallthru
        _
      %v331 = vld [vmem:[%s303] sm:$0xff]
      %v332 = vld [vmem:[%s313] sm:$0xff]
      %v333 = vld [vmem:[%s2] sm:$0xff]
      %v334 = vld [vmem:[%s3] sm:$0xf]
      %v335 = vld [vmem:[%s4] sm:$0xf]
      %v337 = vcombine.high %v331, %v331
      %vm338 = vcmask 31744
      %v340 = vsel %vm338, %v333, 0
      %vm342 = vcmask 1043456
      %v343 = vsel %vm342, %v331, 0
      %v345 = vsel %vm342, %v337, 0
      %347 = vmatprep.subr.mxu0 %v345
      %348 = vmatpush1.msra.mxu0 %v343
      %349 = vmatprep.subr.mxu0 0.0
      %350 = vmatpush1.msra.mxu0 0.0
      %351 = vmatprep.subr.mxu0 0.0
      %352 = vmatpush1.msra.mxu0 0.0
      %353 = vmatprep.subr.mxu0 0.0
      %354 = vmatpush1.msra.mxu0 0.0
      %355 = vmatprep.subr.mxu0 0.0
      %356 = vmatpush1.msra.mxu0 0.0
      %357 = vmatprep.subr.mxu0 0.0
      %358 = vmatpush1.msra.mxu0 0.0
      %359 = vmatprep.subr.mxu0 0.0
      %360 = vmatpush1.msra.mxu0 0.0
      %361 = vmatprep.subr.mxu0 0.0
      %362 = vmatpush1.msra.mxu0 0.0
      %363 = vmatprep.subr.mxu0 0.0
      %364 = vmatpush1.msra.mxu0 0.0
      %365 = vmatprep.subr.mxu0 0.0
      %366 = vmatpush1.msra.mxu0 0.0
      %367 = vmatprep.subr.mxu0 0.0
      %368 = vmatpush1.msra.mxu0 0.0
      %369 = vmatprep.subr.mxu0 0.0
      %370 = vmatpush1.msra.mxu0 0.0
      %371 = vmatprep.subr.mxu0 0.0
      %372 = vmatpush1.msra.mxu0 0.0
      %373 = vmatprep.subr.mxu0 0.0
      %374 = vmatpush1.msra.mxu0 0.0
      %375 = vmatprep.subr.mxu0 0.0
      %376 = vmatpush1.msra.mxu0 0.0
      %377 = vmatprep.subr.mxu0 0.0
      %378 = vmatpush1.msra.mxu0 0.0
      %379 = vmatprep.subr.mxu0 0.0
      %380 = vmatpush1.msra.mxu0 0.0
      %381 = vmatprep.subr.mxu0 0.0
      %382 = vmatpush1.msra.mxu0 0.0
      %383 = vmatprep.subr.mxu0 0.0
      %384 = vmatpush1.msra.mxu0 0.0
      %385 = vmatprep.subr.mxu0 0.0
      %386 = vmatpush1.msra.mxu0 0.0
      %387 = vmatprep.subr.mxu0 0.0
      %388 = vmatpush1.msra.mxu0 0.0
      %389 = vmatprep.subr.mxu0 0.0
      %390 = vmatpush1.msra.mxu0 0.0
      %391 = vmatprep.subr.mxu0 0.0
      %392 = vmatpush1.msra.mxu0 0.0
      %393 = vmatprep.subr.mxu0 0.0
      %394 = vmatpush1.msra.mxu0 0.0
      %395 = vmatprep.subr.mxu0 0.0
      %396 = vmatpush1.msra.mxu0 0.0
      %397 = vmatprep.subr.mxu0 0.0
      %398 = vmatpush1.msra.mxu0 0.0
      %399 = vmatprep.subr.mxu0 0.0
      %400 = vmatpush1.msra.mxu0 0.0
      %401 = vmatprep.subr.mxu0 0.0
      %402 = vmatpush1.msra.mxu0 0.0
      %403 = vmatprep.subr.mxu0 0.0
      %404 = vmatpush1.msra.mxu0 0.0
      %405 = vmatprep.subr.mxu0 0.0
      %406 = vmatpush1.msra.mxu0 0.0
      %407 = vmatprep.subr.mxu0 0.0
      %408 = vmatpush1.msra.mxu0 0.0
      %409 = vmatprep.subr.mxu0 0.0
      %410 = vmatpush1.msra.mxu0 0.0
      %411 = vmatprep.mubr.f32.mxu0 0.0
      %412 = vmatmul.mubr.f32.gmra.mrb[0].mxu0 %v340
      %v413 = vpop.f32.mrb[0].mxu0
      %v414 = vadd.f32 0.0, %v413
      %v415 = vpop.f32.mrb[0].mxu0
      %v416 = vadd.f32 0.0, %v415
      %417 = vdwg.mxu0
      %v418 = vmul.f32 %v333, %v333
      %v419 = vsel %vm338, %v418, 0.0
      %420 = vadd.xlane.f32.xlu0 %v419
      %v421 = vpop.xlane.xlu0 %420
      %v422 = vmul.f32 %v414, 2.0
      %v423 = vmul.f32 %v416, 2.0
      %v424 = vsub.f32 %v421, %v422
      %v425 = vsub.f32 %v421, %v423
      %v426 = vrot.slane %v424, 4
      %v427 = vmin.f32 %v424, %v426
      %v428 = vrot.slane %v427, 2
      %v429 = vmin.f32 %v427, %v428
      %v430 = vrot.slane %v429, 1
      %v431 = vmin.f32 %v429, %v430
      %v432 = vrot.slane %v425, 4
      %v433 = vmin.f32 %v425, %v432
      %v434 = vrot.slane %v433, 2
      %v435 = vmin.f32 %v433, %v434
      %v436 = vrot.slane %v435, 1
      %v437 = vmin.f32 %v435, %v436
      %v438 = vlaneseq
      %v439 = vshrl.u32 %v438, 7
      %vm440 = vcmp.le.f32.partialorder %v424, %v431
      %vm441 = vcmp.le.f32.partialorder %v425, %v437
      %v442 = vsel %vm440, %v439, 8
      %v443 = vsel %vm441, %v439, 8
      %v444 = vrot.slane %v442, 4
      %vm445 = vcmp.lt.s32.totalorder %v442, %v444
      %v446 = vsel %vm445, %v442, %v444
      %v447 = vrot.slane %v446, 2
      %vm448 = vcmp.lt.s32.totalorder %v446, %v447
      %v449 = vsel %vm448, %v446, %v447
      %v450 = vrot.slane %v449, 1
      %vm451 = vcmp.lt.s32.totalorder %v449, %v450
      %v452 = vsel %vm451, %v449, %v450
      %v453 = vrot.slane %v443, 4
      %vm454 = vcmp.lt.s32.totalorder %v443, %v453
      %v455 = vsel %vm454, %v443, %v453
      %v456 = vrot.slane %v455, 2
      %vm457 = vcmp.lt.s32.totalorder %v455, %v456
      %v458 = vsel %vm457, %v455, %v456
      %v459 = vrot.slane %v458, 1
      %vm460 = vcmp.lt.s32.totalorder %v458, %v459
      %v461 = vsel %vm460, %v458, %v459
      %vm462 = vcmp.eq.s32.totalorder %v439, %v452
      %vm463 = vcmp.eq.s32.totalorder %v439, %v461
      %v464 = vsel %vm462, 1, 0
      %v465 = vsel %vm463, 1, 0
      %v466 = vcvt.s32.f32 %v464
      %v467 = vcvt.s32.f32 %v465
      %v468 = vmul.f32 %v331, %v331
      %v470 = vcombine.high %v468, %v468
      %v472 = vsel %vm342, %v468, 0.0
      %v473 = vrot.slane %v472, 4
      %v474 = vadd.f32 %v472, %v473
      %v475 = vrot.slane %v474, 2
      %v476 = vadd.f32 %v474, %v475
      %v477 = vrot.slane %v476, 1
      %v478 = vadd.f32 %v476, %v477
      %v479 = vsel %vm342, %v470, 0.0
      %v480 = vrot.slane %v479, 4
      %v481 = vadd.f32 %v479, %v480
      %v482 = vrot.slane %v481, 2
      %v483 = vadd.f32 %v481, %v482
      %v484 = vrot.slane %v483, 1
      %v485 = vadd.f32 %v483, %v484
      %v486 = vld [vmem:[#allocation2] sm:$0x3]
      %v489 = vcombine.low %v478, %v485
      %v491 = vunpack.c.l.s4 1966171168
      %v492 = vunpack.c.0.s8 %v491
      %v493 = vlaneseq
      %v494 = vshrl.u32 %v493, 7
      %v495 = vsub.s32 %v492, %v494
      %v496 = vrot.slane %v489, %v495
      %v498 = vunpack.c.l.s4 1966171168
      %v499 = vunpack.c.0.s8 %v498
      %v500 = vlaneseq
      %v501 = vshrl.u32 %v500, 7
      %v502 = vsub.s32 %v499, %v501
      %v503 = vrot.slane %v496, %v502
      %v505 = vadd.f32 %v486, %v503
      %v508 = vcombine.low %v431, %v437
      %v510 = vunpack.c.l.s4 1966171168
      %v511 = vunpack.c.0.s8 %v510
      %v512 = vlaneseq
      %v513 = vshrl.u32 %v512, 7
      %v514 = vsub.s32 %v511, %v513
      %v515 = vrot.slane %v508, %v514
      %v517 = vunpack.c.l.s4 1966171168
      %v518 = vunpack.c.0.s8 %v517
      %v519 = vlaneseq
      %v520 = vshrl.u32 %v519, 7
      %v521 = vsub.s32 %v518, %v520
      %v522 = vrot.slane %v515, %v521
      %v524 = vadd.f32 %v505, %v522
      %v525 = vlaneseq
      %vm526 = vcmp.ge.s32.totalorder %v525, 0
      %vm527 = vcmp.lt.s32.totalorder %v525, 256
      %vm528 = vmand %vm526, %vm527
      %529 = vst.msk [vmem:[#allocation2] sm:$0x3] %vm528, %v524
      %531 = vset.pattern.permute.xlu0 0
      %532 = vperm.xlu0 %531, %v335
      %v533 = vpop.permute.xlu0 %532
      %vm535 = vcmask 64512
      %v537 = vsel %vm535, %v334, 0
      %539 = vmatprep.subr.mxu0 %v467
      %540 = vmatpush1.msra.mxu0 %v466
      %541 = vmatprep.subr.mxu0 0.0
      %542 = vmatpush1.msra.mxu0 0.0
      %543 = vmatprep.subr.mxu0 0.0
      %544 = vmatpush1.msra.mxu0 0.0
      %545 = vmatprep.subr.mxu0 0.0
      %546 = vmatpush1.msra.mxu0 0.0
      %547 = vmatprep.subr.mxu0 0.0
      %548 = vmatpush1.msra.mxu0 0.0
      %549 = vmatprep.subr.mxu0 0.0
      %550 = vmatpush1.msra.mxu0 0.0
      %551 = vmatprep.subr.mxu0 0.0
      %552 = vmatpush1.msra.mxu0 0.0
      %553 = vmatprep.subr.mxu0 0.0
      %554 = vmatpush1.msra.mxu0 0.0
      %555 = vmatprep.subr.mxu0 0.0
      %556 = vmatpush1.msra.mxu0 0.0
      %557 = vmatprep.subr.mxu0 0.0
      %558 = vmatpush1.msra.mxu0 0.0
      %559 = vmatprep.subr.mxu0 0.0
      %560 = vmatpush1.msra.mxu0 0.0
      %561 = vmatprep.subr.mxu0 0.0
      %562 = vmatpush1.msra.mxu0 0.0
      %563 = vmatprep.subr.mxu0 0.0
      %564 = vmatpush1.msra.mxu0 0.0
      %565 = vmatprep.subr.mxu0 0.0
      %566 = vmatpush1.msra.mxu0 0.0
      %567 = vmatprep.subr.mxu0 0.0
      %568 = vmatpush1.msra.mxu0 0.0
      %569 = vmatprep.subr.mxu0 0.0
      %570 = vmatpush1.msra.mxu0 0.0
      %571 = vmatprep.subr.mxu0 0.0
      %572 = vmatpush1.msra.mxu0 0.0
      %573 = vmatprep.subr.mxu0 0.0
      %574 = vmatpush1.msra.mxu0 0.0
      %575 = vmatprep.subr.mxu0 0.0
      %576 = vmatpush1.msra.mxu0 0.0
      %577 = vmatprep.subr.mxu0 0.0
      %578 = vmatpush1.msra.mxu0 0.0
      %579 = vmatprep.subr.mxu0 0.0
      %580 = vmatpush1.msra.mxu0 0.0
      %581 = vmatprep.subr.mxu0 0.0
      %582 = vmatpush1.msra.mxu0 0.0
      %583 = vmatprep.subr.mxu0 0.0
      %584 = vmatpush1.msra.mxu0 0.0
      %585 = vmatprep.subr.mxu0 0.0
      %586 = vmatpush1.msra.mxu0 0.0
      %587 = vmatprep.subr.mxu0 0.0
      %588 = vmatpush1.msra.mxu0 0.0
      %589 = vmatprep.subr.mxu0 0.0
      %590 = vmatpush1.msra.mxu0 0.0
      %591 = vmatprep.subr.mxu0 0.0
      %592 = vmatpush1.msra.mxu0 0.0
      %593 = vmatprep.subr.mxu0 0.0
      %594 = vmatpush1.msra.mxu0 0.0
      %595 = vmatprep.subr.mxu0 0.0
      %596 = vmatpush1.msra.mxu0 0.0
      %597 = vmatprep.subr.mxu0 0.0
      %598 = vmatpush1.msra.mxu0 0.0
      %599 = vmatprep.subr.mxu0 0.0
      %600 = vmatpush1.msra.mxu0 0.0
      %601 = vmatprep.subr.mxu0 0.0
      %602 = vmatpush1.msra.mxu0 0.0
      %603 = vmatprep.mubr.f32.mxu0 0.0
      %604 = vmatmul.mubr.f32.gmra.mrb[0].mxu0 %v537
      %v605 = vpop.f32.mrb[0].mxu0
      %v606 = vadd.f32 %v533, %v605
      %v607 = vpop.f32.mrb[0].mxu0
      %v608 = vadd.f32 %v533, %v607
      %609 = vdwg.mxu0
      %v611 = vcombine.high %v332, %v332
      %v613 = vsub.f32 %v606, %v332
      %v614 = vsub.f32 %v608, %v611
      %v615 = vld [vmem:[#allocation3] sm:$0x3]
      %v616 = vmul.f32 %v613, %v613
      %v617 = vmul.f32 %v614, %v614
      %v618 = vsel %vm342, %v616, 0.0
      %v619 = vrot.slane %v618, 4
      %v620 = vadd.f32 %v618, %v619
      %v621 = vrot.slane %v620, 2
      %v622 = vadd.f32 %v620, %v621
      %v623 = vrot.slane %v622, 1
      %v624 = vadd.f32 %v622, %v623
      %v625 = vsel %vm342, %v617, 0.0
      %v626 = vrot.slane %v625, 4
      %v627 = vadd.f32 %v625, %v626
      %v628 = vrot.slane %v627, 2
      %v629 = vadd.f32 %v627, %v628
      %v630 = vrot.slane %v629, 1
      %v631 = vadd.f32 %v629, %v630
      %v634 = vcombine.low %v624, %v631
      %v636 = vunpack.c.l.s4 1966171168
      %v637 = vunpack.c.0.s8 %v636
      %v638 = vlaneseq
      %v639 = vshrl.u32 %v638, 7
      %v640 = vsub.s32 %v637, %v639
      %v641 = vrot.slane %v634, %v640
      %v643 = vunpack.c.l.s4 1966171168
      %v644 = vunpack.c.0.s8 %v643
      %v645 = vlaneseq
      %v646 = vshrl.u32 %v645, 7
      %v647 = vsub.s32 %v644, %v646
      %v648 = vrot.slane %v641, %v647
      %v650 = vadd.f32 %v615, %v648
      %651 = vst.msk [vmem:[#allocation3] sm:$0x3] %vm528, %v650
      // Predicated region
      $region45: #{vq_vae_loss.1} parent=39 // pred_check
        %p652 = pneg %p321
      $region46: #{vq_vae_loss.1} parent=39 // pred_check_branch
        %654 = sbr.rel (%p652) target = $region48
      $region47: #{vq_vae_loss.1} parent=39 // pred_region
        %v655 = vld [vmem:[#allocation2] sm:$0x3]
        %v657 = vlaneseq
        %v658 = vshrl.u32 %v657, 7
        %v659 = vsub.s32 0, %v658
        %v660 = vrot.slane %v655, %v659
        %v661 = vlaneseq
        %v662 = vshrl.u32 %v661, 7
        %v663 = vsub.s32 1, %v662
        %v664 = vrot.slane %v655, %v663
        %vm667 = vcmask 1040384
        %v668 = vsel %vm667, %v660, 0.0
        %v669 = vsel %vm667, %v664, 0.0
        %v670 = vadd.f32 %v668, %v669
        %671 = vadd.xlane.f32.xlu0 %v670
        %v672 = vpop.xlane.xlu0 %671
        %v673 = vrot.slane %v672, 4
        %v674 = vadd.f32 %v672, %v673
        %v675 = vrot.slane %v674, 2
        %v676 = vadd.f32 %v674, %v675
        %v677 = vrot.slane %v676, 1
        %v678 = vadd.f32 %v676, %v677
        %s679 = vtos %v678
        %v680 = vstv %s679
        %vm681 = vcmask 0
        %682 = vst.msk [vmem:[%s317] sm:$0x1] %vm681, %v680
        %v683 = vld [vmem:[#allocation3] sm:$0x3]
        %v685 = vlaneseq
        %v686 = vshrl.u32 %v685, 7
        %v687 = vsub.s32 0, %v686
        %v688 = vrot.slane %v683, %v687
        %v689 = vlaneseq
        %v690 = vshrl.u32 %v689, 7
        %v691 = vsub.s32 1, %v690
        %v692 = vrot.slane %v683, %v691
        %v695 = vsel %vm667, %v688, 0.0
        %v696 = vsel %vm667, %v692, 0.0
        %v697 = vadd.f32 %v695, %v696
        %698 = vadd.xlane.f32.xlu0 %v697
        %v699 = vpop.xlane.xlu0 %698
        %v700 = vrot.slane %v699, 4
        %v701 = vadd.f32 %v699, %v700
        %v702 = vrot.slane %v701, 2
        %v703 = vadd.f32 %v701, %v702
        %v704 = vrot.slane %v703, 1
        %v705 = vadd.f32 %v703, %v704
        %s706 = vtos %v705
        %v707 = vstv %s706
        %708 = vst.msk [vmem:[%s320] sm:$0x1] %vm681, %v707
      $region48: #{vq_vae_loss.1} parent=39 // pred_fallthru
        _
      %p709 = scmp.lt.s32.totalorder %s22, 1
      %s710 = scalar_select %p709, %s22, 1
      %s711 = scalar_lea.vmem %s5, %s710
      %p712 = scmp.lt.s32.totalorder %s22, 1
      %s713 = scalar_select %p712, %s22, 1
      %s714 = scalar_lea.vmem %s6, %s713
      // Predicated region
      $region49: #{vq_vae_loss.1} parent=39 // pred_check
        %p715 = pneg %p167
      $region50: #{vq_vae_loss.1} parent=39 // pred_check_branch
        %717 = sbr.rel (%p715) target = $region52
      $region51: #{vq_vae_loss.1} parent=39 // pred_region
        _
      $region52: #{vq_vae_loss.1} parent=39 // pred_fallthru
        _
      // Predicated region
      $region53: #{vq_vae_loss.1} parent=39 // pred_check
        %p718 = pneg %p193
      $region54: #{vq_vae_loss.1} parent=39 // pred_check_branch
        %720 = sbr.rel (%p718) target = $region56
      $region55: #{vq_vae_loss.1} parent=39 // pred_region
        _
      $region56: #{vq_vae_loss.1} parent=39 // pred_fallthru
        _
    $region40: #{vq_vae_loss.1} parent=5 // pred_fallthru
      _
    %p721 = scmp.le.s32.totalorder 2, %s13
    // Predicated region
    $region57: #{vq_vae_loss.1} parent=5 // pred_check
      %p722 = pneg %p721
    $region58: #{vq_vae_loss.1} parent=5 // pred_check_branch
      %724 = sbr.rel (%p722) target = $region60
    $region59: #{vq_vae_loss.1} parent=5 // pred_region
      %s725 = ssub.s32 %s13, 2
      // Predicated region
      $region61: #{vq_vae_loss.1} parent=59 // pred_check
        %p726 = pneg %p173
      $region62: #{vq_vae_loss.1} parent=59 // pred_check_branch
        %728 = sbr.rel (%p726) target = $region64
      $region63: #{vq_vae_loss.1} parent=59 // pred_region
        %p729 = scmp.lt.s32.totalorder %s24, 1
        %s730 = scalar_select %p729, %s24, 1
        %s731 = scalar_lea.vmem %s5, %s730
      $region64: #{vq_vae_loss.1} parent=59 // pred_fallthru
        _
      // Predicated region
      $region65: #{vq_vae_loss.1} parent=59 // pred_check
        %p732 = pneg %p199
      $region66: #{vq_vae_loss.1} parent=59 // pred_check_branch
        %734 = sbr.rel (%p732) target = $region68
      $region67: #{vq_vae_loss.1} parent=59 // pred_region
        %p735 = scmp.lt.s32.totalorder %s24, 1
        %s736 = scalar_select %p735, %s24, 1
        %s737 = scalar_lea.vmem %s6, %s736
      $region68: #{vq_vae_loss.1} parent=59 // pred_fallthru
        _
    $region60: #{vq_vae_loss.1} parent=5 // pred_fallthru
      _
  $region6: #{vq_vae_loss.1} parent=0 // loop_footer
    %s17 = sadd.s32 1, %s13
  $region7: #{vq_vae_loss.1} parent=0 // loop_footer_branch
    %12 = sbr.rel target = $region3
  $region8: #{vq_vae_loss.1} parent=0 // loop_exit
    _

</llo_original>
